<compile_context>
chip_gen: v6e
topology: v6e:2x2x1
jax: 0.10.0
libtpu: 0.0.40
codegen_flags: <defaults>
</compile_context>

<pallas_src>
import functools

import jax
import jax.numpy as jnp
from jax import lax
from jax.experimental import pallas as pl
from jax.experimental.pallas import tpu as pltpu

_GOLD = 0x9E3779B9
_M1 = 0x7FEB352D
_M2 = 0x846CA68B


def _word_dropout_kernel(seed_ref, x_ref, o_ref, *, threshold31: int, tile_rows: int):
    # Global row index of each row in this tile: (tile_rows, 1); >=2-D iota for TPU.
    row0 = (pl.program_id(0) * tile_rows).astype(jnp.uint32)
    rows = lax.broadcasted_iota(jnp.int32, (tile_rows, 1), 0).astype(jnp.uint32) + row0

    # Stateless splitmix32-style hash of (seed, row) -> ~uniform 32-bit value.
    seed_u = seed_ref[0].astype(jnp.uint32) * jnp.uint32(_GOLD)
    h = rows ^ seed_u
    h = h ^ (h >> jnp.uint32(16))
    h = h * jnp.uint32(_M1)
    h = h ^ (h >> jnp.uint32(15))
    h = h * jnp.uint32(_M2)
    h = h ^ (h >> jnp.uint32(16))

    # Use the top 31 bits and compare in the signed domain (avoids any unsigned
    # compare lowering concerns).  P(keep) = 1 - dropout_rate.
    r31 = (h >> jnp.uint32(1)).astype(jnp.int32)        # value in [0, 2^31)
    keep = r31 >= jnp.int32(threshold31)                # (tile_rows, 1) bool

    xv = x_ref[...]
    o_ref[...] = jnp.where(keep, xv, jnp.zeros_like(xv))


def _choose_tile_rows(rows: int, h: int, itemsize: int) -> int:
    """Largest row tile s.t. in+out double-buffering fits comfortably in VMEM."""
    target_bytes = 4 << 20            # ~4 MiB per tile buffer (4 live buffers ~16 MiB)
    max_rows = 1024                   # per-step-overhead amortization flattens here
    t = min(max_rows, max(16, target_bytes // max(h * itemsize, 1)))
    t = max(16, (int(t) // 16) * 16)  # sublane alignment, safe for f32 and bf16
    if rows <= t:
        return rows                   # single full-height block (full-dim exemption)
    return t


def word_dropout(
    inputs: jax.Array,
    *,
    dropout_rate: float = 0.1,
    training: bool = True,
    seed: int = 0,
) -> jax.Array:
    """WordDropout forward pass. inputs: (batch, seq, hidden)."""
    assert 0.0 <= dropout_rate < 1.0, "0.0 <= dropout rate < 1.0 must be satisfied!"
    if (not training) or (dropout_rate == 0.0):
        return inputs

    b, s, h = inputs.shape
    rows = b * s
    x2d = inputs.reshape(rows, h)
    itemsize = jnp.dtype(inputs.dtype).itemsize

    tile_r = _choose_tile_rows(rows, h, itemsize)
    grid = (pl.cdiv(rows, tile_r),)

    # Integer threshold on 31 random bits:  P(r31 < threshold31) == dropout_rate.
    threshold31 = min(int(round(dropout_rate * float(1 << 31))), (1 << 31) - 1)

    kernel = functools.partial(
        _word_dropout_kernel, threshold31=threshold31, tile_rows=tile_r
    )
    seed_arr = jnp.array([seed], dtype=jnp.int32)

    out2d = pl.pallas_call(
        kernel,
        out_shape=jax.ShapeDtypeStruct((rows, h), inputs.dtype),
        grid_spec=pltpu.PrefetchScalarGridSpec(
            num_scalar_prefetch=1,
            grid=grid,
            in_specs=[pl.BlockSpec((tile_r, h), lambda i, seed_ref: (i, 0))],
            out_specs=pl.BlockSpec((tile_r, h), lambda i, seed_ref: (i, 0)),
        ),
        compiler_params=pltpu.CompilerParams(
            dimension_semantics=("parallel",),
        ),
        cost_estimate=pl.CostEstimate(
            flops=rows * h,
            transcendentals=0,
            bytes_accessed=2 * rows * h * itemsize,
        ),
    )(seed_arr, x2d)

    return out2d.reshape(b, s, h)


if __name__ == "__main__":
    # Small shapes consistent with the module: (batch, seq, hidden).
    B, S, H = 2, 8, 32
    key = jax.random.PRNGKey(0)
    x = jax.random.normal(key, (B, S, H), dtype=jnp.float32)

    out = word_dropout(x, dropout_rate=0.1, training=True, seed=1234)
    out = jax.block_until_ready(out)

    # Sanity: each token row is either exactly preserved or exactly zeroed.
    x_np = jax.device_get(x).reshape(B * S, H)
    o_np = jax.device_get(out).reshape(B * S, H)
    for r in range(B * S):
        kept = bool((o_np[r] == x_np[r]).all())
        dropped = bool((o_np[r] == 0.0).all())
        assert kept or dropped, f"row {r} is neither fully kept nor fully dropped"

    # Eval mode / zero rate: identity.
    out_eval = jax.block_until_ready(word_dropout(x, dropout_rate=0.1, training=False))
    assert bool((jax.device_get(out_eval) == jax.device_get(x)).all())
    out_zero = jax.block_until_ready(word_dropout(x, dropout_rate=0.0, training=True))
    assert bool((jax.device_get(out_zero) == jax.device_get(x)).all())

    print("KERNEL_OK")
</pallas_src>

<mosaic_0001>
module attributes {stable_mosaic.version = 11 : i64} {
  func.func @_word_dropout_kernel(%arg0: i32, %arg1: memref<1xi32, #tpu.memory_space<smem>>, %arg2: memref<16x32xf32, #tpu.memory_space<vmem>>, %arg3: memref<16x32xf32, #tpu.memory_space<vmem>>) attributes {dimension_semantics = [#tpu.dimension_semantics<parallel>], iteration_bounds = array<i64: 1>, scalar_prefetch = 1 : i64, scratch_operands = 0 : i64, tpu.core_type = #tpu.core_type<tc>, window_params = [{transform_indices = @transform_0, window_bounds = array<i64: 16, 32>}, {transform_indices = @transform_1, window_bounds = array<i64: 16, 32>}]} {
    %c16_i32 = arith.constant 16 : i32
    %0 = arith.muli %arg0, %c16_i32 : i32
    %1 = tpu.iota {dimensions = array<i32: 0>} : vector<16x1xi32>
    %2 = vector.broadcast %0 : i32 to vector<16x1xi32>
    %3 = arith.addi %1, %2 : vector<16x1xi32>
    %c0 = arith.constant 0 : index
    %4 = memref.load %arg1[%c0] : memref<1xi32, #tpu.memory_space<smem>>
    %c-1640531527_i32 = arith.constant -1640531527 : i32
    %5 = arith.muli %4, %c-1640531527_i32 : i32
    %6 = vector.broadcast %5 : i32 to vector<16x1xi32>
    %7 = arith.xori %3, %6 : vector<16x1xi32>
    %c16_i32_0 = arith.constant 16 : i32
    %8 = vector.broadcast %c16_i32_0 : i32 to vector<16x1xi32>
    %9 = arith.shrui %7, %8 : vector<16x1xi32>
    %10 = arith.xori %7, %9 : vector<16x1xi32>
    %c2146121005_i32 = arith.constant 2146121005 : i32
    %11 = vector.broadcast %c2146121005_i32 : i32 to vector<16x1xi32>
    %12 = arith.muli %10, %11 : vector<16x1xi32>
    %c15_i32 = arith.constant 15 : i32
    %13 = vector.broadcast %c15_i32 : i32 to vector<16x1xi32>
    %14 = arith.shrui %12, %13 : vector<16x1xi32>
    %15 = arith.xori %12, %14 : vector<16x1xi32>
    %c-2073254261_i32 = arith.constant -2073254261 : i32
    %16 = vector.broadcast %c-2073254261_i32 : i32 to vector<16x1xi32>
    %17 = arith.muli %15, %16 : vector<16x1xi32>
    %c16_i32_1 = arith.constant 16 : i32
    %18 = vector.broadcast %c16_i32_1 : i32 to vector<16x1xi32>
    %19 = arith.shrui %17, %18 : vector<16x1xi32>
    %20 = arith.xori %17, %19 : vector<16x1xi32>
    %c1_i32 = arith.constant 1 : i32
    %21 = vector.broadcast %c1_i32 : i32 to vector<16x1xi32>
    %22 = arith.shrui %20, %21 : vector<16x1xi32>
    %c214748365_i32 = arith.constant 214748365 : i32
    %23 = vector.broadcast %c214748365_i32 : i32 to vector<16x1xi32>
    %24 = arith.cmpi sge, %22, %23 : vector<16x1xi32>
    %c0_2 = arith.constant 0 : index
    %c0_3 = arith.constant 0 : index
    %25 = vector.load %arg2[%c0_2, %c0_3] : memref<16x32xf32, #tpu.memory_space<vmem>>, vector<16x32xf32>
    %cst = arith.constant 0.000000e+00 : f32
    %26 = vector.broadcast %cst : f32 to vector<16x32xf32>
    %27 = vector.shape_cast %24 : vector<16x1xi1> to vector<16x1xi1>
    %28 = vector.broadcast %27 : vector<16x1xi1> to vector<16x32xi1>
    %29 = arith.select %28, %25, %26 : vector<16x32xi1>, vector<16x32xf32>
    %c0_4 = arith.constant 0 : index
    %c0_5 = arith.constant 0 : index
    %30 = vector.load %arg3[%c0_4, %c0_5] : memref<16x32xf32, #tpu.memory_space<vmem>>, vector<16x32xf32>
    tpu.vector_store %arg3[%c0_4, %c0_5], %29 {strides = array<i32>} : memref<16x32xf32, #tpu.memory_space<vmem>>, vector<16x32xf32>,
    return
  }
  func.func @transform_0(%arg0: i32, %arg1: memref<1xi32, #tpu.memory_space<smem>>) -> (i32, i32) {
    %c0_i32 = arith.constant 0 : i32
    %c0_i32_0 = arith.constant 0 : i32
    return %arg0, %c0_i32 : i32, i32
  }
  func.func @transform_1(%arg0: i32, %arg1: memref<1xi32, #tpu.memory_space<smem>>) -> (i32, i32) {
    %c0_i32 = arith.constant 0 : i32
    %c0_i32_0 = arith.constant 0 : i32
    return %arg0, %c0_i32 : i32, i32
  }
}

</mosaic_0001>

<llo_original>
// kernel: tpu_custom_call.1
$region0: #{tpu_custom_call.1}
  #allocation0 [shape = 'u32[]', space=smem, size = 0x4, offset = 0x4, fixed_abs, tag = 'smem constant byte address 0x4 - core index']
  #allocation1 [shape = 'u32[144,128]{1,0:T(1,128)}', space=vmem, size = 0x12000, scoped, tag = 'internal scratch']
  #allocation2 [shape = 's32[1]{0}', space=sflag, size = 0x4, scoped, tag = 'scoped memory for tpu_custom_call.1']
  #allocation3 [shape = 's32[1]{0:T(128)S(6)}', space=smem, size = 0x200, scoped, tag = 'prefetched SMEM operand 0']
  %s0 = inlined_call_operand.<no memory space> [shape: s32[1], index: 0, kind: input, shape index: {}]
  %s1 = inlined_call_operand.hbm [shape: f32[16,32], index: 1, kind: input, shape index: {}]
  %s2 = inlined_call_operand.hbm [shape: f32[16,32], index: 2, kind: output, shape index: {}]
  %s3 = sld [smem:[#allocation0]]
  $region18: #{tpu_custom_call.1} parent=0
    _
  %s5 = ssub.s32 1, %s3
  %s6 = scalar_select 0, %s5, %s3
  %7 = sst [smem:[#allocation3]] %s0
  $region1: #{tpu_custom_call.1} parent=0
    #allocation4 [shape = 'u8[8192]{0}', space=vmem, size = 0x2000, scoped, tag = 'input window, operand 1, single buffered']
    #allocation5 [shape = 's32[1]{0}', space=sflag, size = 0x4, scoped, tag = 'scoped memory for tpu_custom_call.1']
    #allocation6 [shape = 's32[1]{0}', space=sflag, size = 0x4, scoped, tag = 'scoped memory for tpu_custom_call.1']
    #allocation7 [shape = 'u8[8192]{0}', space=vmem, size = 0x2000, scoped, tag = 'output window, operand 0, single buffered']
    %8 = vsyncpa [#allocation5], 0
    %9 = vsyncpa [#allocation6], 0
    // Predicated region
    $region2: #{tpu_custom_call.1} parent=1 // pred_check
      _
    $region3: #{tpu_custom_call.1} parent=1 // pred_check_branch
      %11 = sbr.rel (0) target = $region5
    $region4: #{tpu_custom_call.1} parent=1 // pred_region
      %s13 = ssub.s32 256, 256
      %14 = vsyncadd [#allocation5], %s13
      %s15 = sshll.u32 [#allocation4], 4
      %s16 = int_to_ptr.vmem [resolvable:$true] %s15
      %21 = dma.hbm_to_vmem [thread:$0]  %s1, 256, %s16, [#allocation5], 128, 128, 8
    $region5: #{tpu_custom_call.1} parent=1 // pred_fallthru
      _
    // Predicated region
    $region6: #{tpu_custom_call.1} parent=1 // pred_check
      _
    $region7: #{tpu_custom_call.1} parent=1 // pred_check_branch
      %23 = sbr.rel (0) target = $region9
    $region8: #{tpu_custom_call.1} parent=1 // pred_region
      %24 = dma.done [#allocation5], 256
    $region9: #{tpu_custom_call.1} parent=1 // pred_fallthru
      _
    %s25 = smul.u32 0, 16
    %v26 = vlaneseq
    %v27 = vshrl.u32 %v26, 7
    %v28 = vadd.s32 %v27, 8
    %v29 = vstv %s25
    %v30 = vadd.s32 %v27, %v29
    %v31 = vadd.s32 %v28, %v29
    %s32 = sld [smem:[#allocation3]]
    %s33 = smul.u32 %s32, 2654435769
    %v34 = vstv %s33
    %v35 = vxor.u32 %v30, %v34
    %v36 = vxor.u32 %v31, %v34
    %v37 = vshrl.u32 %v35, 16
    %v38 = vshrl.u32 %v36, 16
    %v39 = vxor.u32 %v35, %v37
    %v40 = vxor.u32 %v36, %v38
    %v41 = vmul.u32 %v39, 2146121005
    %v42 = vmul.u32 %v40, 2146121005
    %v43 = vshrl.u32 %v41, 15
    %v44 = vshrl.u32 %v42, 15
    %v45 = vxor.u32 %v41, %v43
    %v46 = vxor.u32 %v42, %v44
    %v47 = vmul.u32 %v45, 2221713035
    %v48 = vmul.u32 %v46, 2221713035
    %v49 = vshrl.u32 %v47, 16
    %v50 = vshrl.u32 %v48, 16
    %v51 = vxor.u32 %v47, %v49
    %v52 = vxor.u32 %v48, %v50
    %v53 = vshrl.u32 %v51, 1
    %v54 = vshrl.u32 %v52, 1
    %vm55 = vcmp.ge.s32.totalorder %v53, 214748365
    %vm56 = vcmp.ge.s32.totalorder %v54, 214748365
    %v57 = vld [vmem:[#allocation4] sm:$0xff]
    %v58 = vld [vmem:[#allocation4 + $0x8] sm:$0xff]
    %v59 = vsel %vm55, 1, 0
    %v60 = vsel %vm56, 1, 0
    %vm61 = vcmp.eq.s32.totalorder %v59, 1
    %vm62 = vcmp.eq.s32.totalorder %v60, 1
    %v63 = vsel %vm61, %v57, 0.0
    %v64 = vsel %vm62, %v58, 0.0
    %vm65 = vcmask 261120
    %66 = vst.msk [vmem:[#allocation7] sm:$0xff] %vm65, %v63
    %67 = vst.msk [vmem:[#allocation7 + $0x8] sm:$0xff] %vm65, %v64
    // Predicated region
    $region10: #{tpu_custom_call.1} parent=1 // pred_check
      _
    $region11: #{tpu_custom_call.1} parent=1 // pred_check_branch
      %69 = sbr.rel (0) target = $region13
    $region12: #{tpu_custom_call.1} parent=1 // pred_region
      %s71 = ssub.s32 256, 256
      %72 = vsyncadd [#allocation6], %s71
      %s73 = sshll.u32 [#allocation7], 4
      %s74 = int_to_ptr.vmem [resolvable:$true] %s73
      %79 = dma.vmem_to_hbm [thread:$0]  %s74, 256, %s2, [#allocation6], 128, 128, 8
    $region13: #{tpu_custom_call.1} parent=1 // pred_fallthru
      _
    // Predicated region
    $region14: #{tpu_custom_call.1} parent=1 // pred_check
      _
    $region15: #{tpu_custom_call.1} parent=1 // pred_check_branch
      %81 = sbr.rel (0) target = $region17
    $region16: #{tpu_custom_call.1} parent=1 // pred_region
      %82 = dma.done [#allocation6], 256
    $region17: #{tpu_custom_call.1} parent=1 // pred_fallthru
      _
    %83 = vsyncpa [#allocation5], 1
    %84 = vsyncpa [#allocation6], 1

</llo_original>
